<compile_context>
chip_gen: v5e
topology: v5e:2x2
jax: 0.10.0
libtpu: 0.0.40
codegen_flags: <defaults>
</compile_context>

<pallas_src>
import functools

import jax
import jax.numpy as jnp
from jax.experimental import pallas as pl
from jax.experimental.pallas import tpu as pltpu

_IN_FEATURES = 20
_DEFAULT_TILE_M_SAMPLES = 16384  # samples per grid step (pre-packing)


def _round_up(n, m):
    return ((n + m - 1) // m) * m


def _default_pack_factor():
    """6 samples/row on 128-wide-MXU chips (v2-v5), 12 on v6e/v7x (256-wide)."""
    try:
        kind = jax.devices()[0].device_kind.lower()
    except Exception:
        return 6
    if any(v in kind for v in ("v2", "v3", "v4", "v5")):
        return 6
    return 12


_PACK = _default_pack_factor()


def _block_diag(w, p):
    """Block-diagonal matrix with p copies of w (fan_in, fan_out) on the diagonal."""
    fan_in, fan_out = w.shape
    bd = jnp.zeros((p, fan_in, p, fan_out), w.dtype)
    idx = jnp.arange(p)
    bd = bd.at[idx, :, idx, :].set(w)
    return bd.reshape(p * fan_in, p * fan_out)


def _mlp_kernel(x_ref, w0_ref, b0_ref, w1_ref, b1_ref, w2_ref, b2_ref, o_ref):
    x = x_ref[...]  # (tm, P*20): P samples folded per row

    # dense0 + ReLU (block-diag MXU matmul, f32 accumulation)
    h0 = jnp.dot(x, w0_ref[...], preferred_element_type=jnp.float32) + b0_ref[...]
    h0 = jnp.maximum(h0, 0.0)

    # Dropout(0.5): identity at inference time.
    # TODO(synk): training-mode dropout (stochastic mask via pltpu.prng_random_bits) not emitted.

    # dense1 + ReLU (block-diag MXU matmul, f32 accumulation)
    h1 = jnp.dot(h0, w1_ref[...], preferred_element_type=jnp.float32) + b1_ref[...]
    h1 = jnp.maximum(h1, 0.0)

    # output layer (10 -> 1) folded into the block-diag W2 (P*10, P) MXU matmul:
    # result is already P lanes wide (one output per folded sample).
    out = jnp.dot(h1, w2_ref[...], preferred_element_type=jnp.float32) + b2_ref[...]
    o_ref[...] = out.astype(o_ref.dtype)


@functools.partial(jax.jit, static_argnames=("pack", "tile_m_samples"))
def my_regressor_forward(x, params, pack=_PACK, tile_m_samples=_DEFAULT_TILE_M_SAMPLES):
    """x: (B, 20) float32; params: dict of weights/biases in (in, out) layout."""
    B, F = x.shape
    assert F == _IN_FEATURES, F

    w0, b0 = params["w0"], params["b0"]
    w1, b1 = params["w1"], params["b1"]
    w2, b2 = params["w2"], params["b2"]
    num_units = w0.shape[1]   # 10
    hidden1 = w1.shape[1]     # 10

    # --- Sample-folded, block-diagonal operands -----------------------------
    w0_bd = _block_diag(w0, pack)                 # (P*20, P*num_units)
    w1_bd = _block_diag(w1, pack)                 # (P*num_units, P*hidden1)
    w2_bd = _block_diag(w2, pack)                 # (P*hidden1, P)
    b0_t = jnp.tile(b0, (1, pack))                # (1, P*num_units)
    b1_t = jnp.tile(b1, (1, pack))                # (1, P*hidden1)
    b2_t = jnp.tile(b2, (1, pack))                # (1, P)

    # --- Balanced batch tiling on packed rows --------------------------------
    rows = pl.cdiv(B, pack)
    max_tile_rows = max(8, tile_m_samples // pack)
    n_tiles = pl.cdiv(rows, max_tile_rows)
    if n_tiles > 1 and n_tiles % 2:
        n_tiles += 1  # even grid so v7x's two TensorCores split the batch evenly
    tm = _round_up(pl.cdiv(rows, n_tiles), 8)
    rows_padded = _round_up(rows, tm)
    grid = (rows_padded // tm,)

    # Pad the sample axis, then fold P samples per row.
    b_padded = rows_padded * pack
    if b_padded != B:
        x = jnp.pad(x, ((0, b_padded - B), (0, 0)))
    x_packed = x.reshape(rows_padded, pack * F)

    # Advisory cost estimate (real per-sample flops; memory-bound kernel).
    flops = 2 * b_padded * (F * num_units + num_units * hidden1 + hidden1)
    param_bytes = 4 * (w0_bd.size + b0_t.size + w1_bd.size + b1_t.size
                       + w2_bd.size + b2_t.size)
    bytes_accessed = x_packed.size * 4 + b_padded * 4 + param_bytes

    out = pl.pallas_call(
        _mlp_kernel,
        out_shape=jax.ShapeDtypeStruct((rows_padded, pack), jnp.float32),
        grid=grid,
        in_specs=[
            # x: streamed per packed batch tile.
            pl.BlockSpec((tm, pack * F), lambda i: (i, 0)),
            # weights/biases: constant index maps -> VMEM-resident across steps.
            pl.BlockSpec(w0_bd.shape, lambda i: (0, 0)),
            pl.BlockSpec(b0_t.shape, lambda i: (0, 0)),
            pl.BlockSpec(w1_bd.shape, lambda i: (0, 0)),
            pl.BlockSpec(b1_t.shape, lambda i: (0, 0)),
            pl.BlockSpec(w2_bd.shape, lambda i: (0, 0)),
            pl.BlockSpec(b2_t.shape, lambda i: (0, 0)),
        ],
        out_specs=pl.BlockSpec((tm, pack), lambda i: (i, 0)),
        compiler_params=pltpu.CompilerParams(
            dimension_semantics=("parallel",),
        ),
        cost_estimate=pl.CostEstimate(
            flops=flops, transcendentals=0, bytes_accessed=bytes_accessed
        ),
    )(x_packed, w0_bd, b0_t, w1_bd, b1_t, w2_bd, b2_t)

    # Unfold: (rows_padded, P) -> (rows_padded*P, 1), drop padded samples.
    return out.reshape(b_padded, 1)[:B]


def init_params(key, num_units=10):
    """Deterministic init mimicking PyTorch nn.Linear (uniform +/- 1/sqrt(fan_in))."""
    def linear(key, fan_in, fan_out):
        kw, kb = jax.random.split(key)
        bound = 1.0 / jnp.sqrt(fan_in)
        w = jax.random.uniform(kw, (fan_in, fan_out), jnp.float32, -bound, bound)
        b = jax.random.uniform(kb, (1, fan_out), jnp.float32, -bound, bound)
        return w, b

    k0, k1, k2 = jax.random.split(key, 3)
    w0, b0 = linear(k0, _IN_FEATURES, num_units)
    w1, b1 = linear(k1, num_units, 10)
    w2, b2 = linear(k2, 10, 1)
    return {"w0": w0, "b0": b0, "w1": w1, "b1": b1, "w2": w2, "b2": b2}


def reference_forward(x, p):
    h0 = jnp.maximum(x @ p["w0"] + p["b0"], 0.0)
    h1 = jnp.maximum(h0 @ p["w1"] + p["b1"], 0.0)
    return h1 @ p["w2"] + p["b2"]


if __name__ == "__main__":
    key = jax.random.PRNGKey(0)
    kx, kp, kx2 = jax.random.split(key, 3)

    params = init_params(kp, num_units=10)

    # Small batch: single grid step, packed rows padded up to 8 sublanes.
    B = 8
    x = jax.random.normal(kx, (B, _IN_FEATURES), jnp.float32)
    out = jax.block_until_ready(my_regressor_forward(x, params))
    ref = reference_forward(x, params)
    assert out.shape == (B, 1), out.shape
    assert jnp.allclose(out, ref, atol=1e-5, rtol=1e-5), "mismatch vs reference (B=8)"

    # Larger, pack- and tile-unaligned batch with a small per-step sample budget:
    # exercises sample padding, balanced multi-step (even) grid, VMEM-resident weights.
    B2 = 1000
    x2 = jax.random.normal(kx2, (B2, _IN_FEATURES), jnp.float32)
    out2 = jax.block_until_ready(my_regressor_forward(x2, params, tile_m_samples=256))
    ref2 = reference_forward(x2, params)
    assert out2.shape == (B2, 1), out2.shape
    assert jnp.allclose(out2, ref2, atol=1e-5, rtol=1e-5), "mismatch vs reference (B=1000)"

    print("KERNEL_OK")
</pallas_src>

<mosaic_0001>
module attributes {stable_mosaic.version = 11 : i64} {
  func.func @_mlp_kernel(%arg0: i32, %arg1: memref<8x240xf32, #tpu.memory_space<vmem>>, %arg2: memref<240x120xf32, #tpu.memory_space<vmem>>, %arg3: memref<1x120xf32, #tpu.memory_space<vmem>>, %arg4: memref<120x120xf32, #tpu.memory_space<vmem>>, %arg5: memref<1x120xf32, #tpu.memory_space<vmem>>, %arg6: memref<120x12xf32, #tpu.memory_space<vmem>>, %arg7: memref<1x12xf32, #tpu.memory_space<vmem>>, %arg8: memref<8x12xf32, #tpu.memory_space<vmem>>) attributes {dimension_semantics = [#tpu.dimension_semantics<parallel>], iteration_bounds = array<i64: 1>, scalar_prefetch = 0 : i64, scratch_operands = 0 : i64, tpu.core_type = #tpu.core_type<tc>, window_params = [{transform_indices = @transform_0, window_bounds = array<i64: 8, 240>}, {pipeline_mode = #tpu.pipeline_mode<synchronous>, transform_indices = @transform_1, window_bounds = array<i64: 240, 120>}, {pipeline_mode = #tpu.pipeline_mode<synchronous>, transform_indices = @transform_2, window_bounds = array<i64: 1, 120>}, {pipeline_mode = #tpu.pipeline_mode<synchronous>, transform_indices = @transform_3, window_bounds = array<i64: 120, 120>}, {pipeline_mode = #tpu.pipeline_mode<synchronous>, transform_indices = @transform_4, window_bounds = array<i64: 1, 120>}, {pipeline_mode = #tpu.pipeline_mode<synchronous>, transform_indices = @transform_5, window_bounds = array<i64: 120, 12>}, {pipeline_mode = #tpu.pipeline_mode<synchronous>, transform_indices = @transform_6, window_bounds = array<i64: 1, 12>}, {transform_indices = @transform_7, window_bounds = array<i64: 8, 12>}]} {
    %c0 = arith.constant 0 : index
    %c0_0 = arith.constant 0 : index
    %0 = vector.load %arg1[%c0, %c0_0] : memref<8x240xf32, #tpu.memory_space<vmem>>, vector<8x240xf32>
    %c0_1 = arith.constant 0 : index
    %c0_2 = arith.constant 0 : index
    %1 = vector.load %arg2[%c0_1, %c0_2] : memref<240x120xf32, #tpu.memory_space<vmem>>, vector<240x120xf32>
    %cst = arith.constant dense<0.000000e+00> : vector<8x120xf32>
    %2 = tpu.matmul %0, %1, %cst {dimension_numbers = #tpu.dot_dimension_numbers<[1], [0], [0], [1], [0, 0, 1, 1], [], []>} : vector<8x240xf32>, vector<240x120xf32>, vector<8x120xf32> -> vector<8x120xf32>
    %c0_3 = arith.constant 0 : index
    %c0_4 = arith.constant 0 : index
    %3 = vector.load %arg3[%c0_3, %c0_4] : memref<1x120xf32, #tpu.memory_space<vmem>>, vector<1x120xf32>
    %4 = vector.broadcast %3 : vector<1x120xf32> to vector<8x120xf32>
    %5 = arith.addf %2, %4 : vector<8x120xf32>
    %cst_5 = arith.constant 0.000000e+00 : f32
    %6 = vector.broadcast %cst_5 : f32 to vector<8x120xf32>
    %7 = arith.maximumf %5, %6 : vector<8x120xf32>
    %c0_6 = arith.constant 0 : index
    %c0_7 = arith.constant 0 : index
    %8 = vector.load %arg4[%c0_6, %c0_7] : memref<120x120xf32, #tpu.memory_space<vmem>>, vector<120x120xf32>
    %cst_8 = arith.constant dense<0.000000e+00> : vector<8x120xf32>
    %9 = tpu.matmul %7, %8, %cst_8 {dimension_numbers = #tpu.dot_dimension_numbers<[1], [0], [0], [1], [0, 0, 1, 1], [], []>} : vector<8x120xf32>, vector<120x120xf32>, vector<8x120xf32> -> vector<8x120xf32>
    %c0_9 = arith.constant 0 : index
    %c0_10 = arith.constant 0 : index
    %10 = vector.load %arg5[%c0_9, %c0_10] : memref<1x120xf32, #tpu.memory_space<vmem>>, vector<1x120xf32>
    %11 = vector.broadcast %10 : vector<1x120xf32> to vector<8x120xf32>
    %12 = arith.addf %9, %11 : vector<8x120xf32>
    %cst_11 = arith.constant 0.000000e+00 : f32
    %13 = vector.broadcast %cst_11 : f32 to vector<8x120xf32>
    %14 = arith.maximumf %12, %13 : vector<8x120xf32>
    %c0_12 = arith.constant 0 : index
    %c0_13 = arith.constant 0 : index
    %15 = vector.load %arg6[%c0_12, %c0_13] : memref<120x12xf32, #tpu.memory_space<vmem>>, vector<120x12xf32>
    %cst_14 = arith.constant dense<0.000000e+00> : vector<8x12xf32>
    %16 = tpu.matmul %14, %15, %cst_14 {dimension_numbers = #tpu.dot_dimension_numbers<[1], [0], [0], [1], [0, 0, 1, 1], [], []>} : vector<8x120xf32>, vector<120x12xf32>, vector<8x12xf32> -> vector<8x12xf32>
    %c0_15 = arith.constant 0 : index
    %c0_16 = arith.constant 0 : index
    %17 = vector.load %arg7[%c0_15, %c0_16] : memref<1x12xf32, #tpu.memory_space<vmem>>, vector<1x12xf32>
    %18 = vector.broadcast %17 : vector<1x12xf32> to vector<8x12xf32>
    %19 = arith.addf %16, %18 : vector<8x12xf32>
    %c0_17 = arith.constant 0 : index
    %c0_18 = arith.constant 0 : index
    %20 = vector.load %arg8[%c0_17, %c0_18] : memref<8x12xf32, #tpu.memory_space<vmem>>, vector<8x12xf32>
    tpu.vector_store %arg8[%c0_17, %c0_18], %19 {strides = array<i32>} : memref<8x12xf32, #tpu.memory_space<vmem>>, vector<8x12xf32>,
    return
  }
  func.func @transform_0(%arg0: i32) -> (i32, i32) {
    %c0_i32 = arith.constant 0 : i32
    %c0_i32_0 = arith.constant 0 : i32
    return %arg0, %c0_i32 : i32, i32
  }
  func.func @transform_1(%arg0: i32) -> (i32, i32) {
    %c0_i32 = arith.constant 0 : i32
    %c0_i32_0 = arith.constant 0 : i32
    %c0_i32_1 = arith.constant 0 : i32
    return %c0_i32, %c0_i32_0 : i32, i32
  }
  func.func @transform_2(%arg0: i32) -> (i32, i32) {
    %c0_i32 = arith.constant 0 : i32
    %c0_i32_0 = arith.constant 0 : i32
    %c0_i32_1 = arith.constant 0 : i32
    return %c0_i32, %c0_i32_0 : i32, i32
  }
  func.func @transform_3(%arg0: i32) -> (i32, i32) {
    %c0_i32 = arith.constant 0 : i32
    %c0_i32_0 = arith.constant 0 : i32
    %c0_i32_1 = arith.constant 0 : i32
    return %c0_i32, %c0_i32_0 : i32, i32
  }
  func.func @transform_4(%arg0: i32) -> (i32, i32) {
    %c0_i32 = arith.constant 0 : i32
    %c0_i32_0 = arith.constant 0 : i32
    %c0_i32_1 = arith.constant 0 : i32
    return %c0_i32, %c0_i32_0 : i32, i32
  }
  func.func @transform_5(%arg0: i32) -> (i32, i32) {
    %c0_i32 = arith.constant 0 : i32
    %c0_i32_0 = arith.constant 0 : i32
    %c0_i32_1 = arith.constant 0 : i32
    return %c0_i32, %c0_i32_0 : i32, i32
  }
  func.func @transform_6(%arg0: i32) -> (i32, i32) {
    %c0_i32 = arith.constant 0 : i32
    %c0_i32_0 = arith.constant 0 : i32
    %c0_i32_1 = arith.constant 0 : i32
    return %c0_i32, %c0_i32_0 : i32, i32
  }
  func.func @transform_7(%arg0: i32) -> (i32, i32) {
    %c0_i32 = arith.constant 0 : i32
    %c0_i32_0 = arith.constant 0 : i32
    return %arg0, %c0_i32 : i32, i32
  }
}

</mosaic_0001>

<llo_original>
// kernel: my_regressor_forward.1
$region0: #{my_regressor_forward.1}
  #allocation0 [shape = 'u32[]', space=smem, size = 0x4, offset = 0x4, fixed_abs, tag = 'smem constant byte address 0x4 - core index']
  #allocation1 [shape = 'u32[72,128]{1,0:T(1,128)}', space=vmem, size = 0x9000, scoped, tag = 'internal scratch']
  %s0 = inlined_call_operand.vmem [shape: f32[8,240], index: 0, kind: input, shape index: {}]
  %s1 = inlined_call_operand.vmem [shape: f32[240,120], index: 1, kind: input, shape index: {}]
  %s2 = inlined_call_operand.vmem [shape: f32[1,120], index: 2, kind: input, shape index: {}]
  %s3 = inlined_call_operand.vmem [shape: f32[120,120], index: 3, kind: input, shape index: {}]
  %s4 = inlined_call_operand.vmem [shape: f32[1,120], index: 4, kind: input, shape index: {}]
  %s5 = inlined_call_operand.vmem [shape: f32[120,12], index: 5, kind: input, shape index: {}]
  %s6 = inlined_call_operand.vmem [shape: f32[1,12], index: 6, kind: input, shape index: {}]
  %s7 = inlined_call_operand.vmem [shape: f32[8,12], index: 7, kind: output, shape index: {}]
  %s8 = sld [smem:[#allocation0]]
  $region38: #{my_regressor_forward.1} parent=0
    _
  %s10 = ssub.s32 1, %s8
  %s11 = scalar_select 0, %s10, %s8
  // Predicated region
  $region2: #{my_regressor_forward.1} parent=0 // pred_check
    _
  $region3: #{my_regressor_forward.1} parent=0 // pred_check_branch
    %13 = sbr.rel (0) target = $region5
  $region4: #{my_regressor_forward.1} parent=0 // pred_region
    _
  $region5: #{my_regressor_forward.1} parent=0 // pred_fallthru
    _
  // Predicated region
  $region6: #{my_regressor_forward.1} parent=0 // pred_check
    _
  $region7: #{my_regressor_forward.1} parent=0 // pred_check_branch
    %15 = sbr.rel (0) target = $region9
  $region8: #{my_regressor_forward.1} parent=0 // pred_region
    _
  $region9: #{my_regressor_forward.1} parent=0 // pred_fallthru
    _
  // Predicated region
  $region10: #{my_regressor_forward.1} parent=0 // pred_check
    _
  $region11: #{my_regressor_forward.1} parent=0 // pred_check_branch
    %17 = sbr.rel (0) target = $region13
  $region12: #{my_regressor_forward.1} parent=0 // pred_region
    _
  $region13: #{my_regressor_forward.1} parent=0 // pred_fallthru
    _
  // Predicated region
  $region14: #{my_regressor_forward.1} parent=0 // pred_check
    _
  $region15: #{my_regressor_forward.1} parent=0 // pred_check_branch
    %19 = sbr.rel (0) target = $region17
  $region16: #{my_regressor_forward.1} parent=0 // pred_region
    _
  $region17: #{my_regressor_forward.1} parent=0 // pred_fallthru
    _
  // Predicated region
  $region18: #{my_regressor_forward.1} parent=0 // pred_check
    _
  $region19: #{my_regressor_forward.1} parent=0 // pred_check_branch
    %21 = sbr.rel (0) target = $region21
  $region20: #{my_regressor_forward.1} parent=0 // pred_region
    _
  $region21: #{my_regressor_forward.1} parent=0 // pred_fallthru
    _
  // Predicated region
  $region22: #{my_regressor_forward.1} parent=0 // pred_check
    _
  $region23: #{my_regressor_forward.1} parent=0 // pred_check_branch
    %23 = sbr.rel (0) target = $region25
  $region24: #{my_regressor_forward.1} parent=0 // pred_region
    _
  $region25: #{my_regressor_forward.1} parent=0 // pred_fallthru
    _
  // Predicated region
  $region26: #{my_regressor_forward.1} parent=0 // pred_check
    _
  $region27: #{my_regressor_forward.1} parent=0 // pred_check_branch
    %25 = sbr.rel (0) target = $region29
  $region28: #{my_regressor_forward.1} parent=0 // pred_region
    _
  $region29: #{my_regressor_forward.1} parent=0 // pred_fallthru
    _
  %v26 = vld [vmem:[%s0] sm:$0xff]
  %v27 = vld [vmem:[%s0 + $0x8] sm:$0xff]
  %v28 = vld [vmem:[%s1] sm:$0xff]
  %v29 = vld [vmem:[%s1 + $0x8] sm:$0xff]
  %v30 = vld [vmem:[%s1 + $0x10] sm:$0xff]
  %v31 = vld [vmem:[%s1 + $0x18] sm:$0xff]
  %v32 = vld [vmem:[%s1 + $0x20] sm:$0xff]
  %v33 = vld [vmem:[%s1 + $0x28] sm:$0xff]
  %v34 = vld [vmem:[%s1 + $0x30] sm:$0xff]
  %v35 = vld [vmem:[%s1 + $0x38] sm:$0xff]
  %v36 = vld [vmem:[%s1 + $0x40] sm:$0xff]
  %v37 = vld [vmem:[%s1 + $0x48] sm:$0xff]
  %v38 = vld [vmem:[%s1 + $0x50] sm:$0xff]
  %v39 = vld [vmem:[%s1 + $0x58] sm:$0xff]
  %v40 = vld [vmem:[%s1 + $0x60] sm:$0xff]
  %v41 = vld [vmem:[%s1 + $0x68] sm:$0xff]
  %v42 = vld [vmem:[%s1 + $0x70] sm:$0xff]
  %v43 = vld [vmem:[%s1 + $0x78] sm:$0xff]
  %v44 = vld [vmem:[%s1 + $0x80] sm:$0xff]
  %v45 = vld [vmem:[%s1 + $0x88] sm:$0xff]
  %v46 = vld [vmem:[%s1 + $0x90] sm:$0xff]
  %v47 = vld [vmem:[%s1 + $0x98] sm:$0xff]
  %v48 = vld [vmem:[%s1 + $0xa0] sm:$0xff]
  %v49 = vld [vmem:[%s1 + $0xa8] sm:$0xff]
  %v50 = vld [vmem:[%s1 + $0xb0] sm:$0xff]
  %v51 = vld [vmem:[%s1 + $0xb8] sm:$0xff]
  %v52 = vld [vmem:[%s1 + $0xc0] sm:$0xff]
  %v53 = vld [vmem:[%s1 + $0xc8] sm:$0xff]
  %v54 = vld [vmem:[%s1 + $0xd0] sm:$0xff]
  %v55 = vld [vmem:[%s1 + $0xd8] sm:$0xff]
  %v56 = vld [vmem:[%s1 + $0xe0] sm:$0xff]
  %v57 = vld [vmem:[%s1 + $0xe8] sm:$0xff]
  %v58 = vld [vmem:[%s2] sm:$0x1]
  %v60 = vperm.slane %v58, 0
  %vm62 = vcmask 916480
  %v64 = vsel %vm62, %v27, 0
  %66 = vmatpush.msra.mxu0 %v43
  %67 = vmatpush.msra.mxu0 %v42
  %68 = vmatpush.msra.mxu0 %v41
  %69 = vmatpush.msra.mxu0 %v40
  %70 = vmatpush.msra.mxu0 %v39
  %71 = vmatpush.msra.mxu0 %v38
  %72 = vmatpush.msra.mxu0 %v37
  %73 = vmatpush.msra.mxu0 %v36
  %74 = vmatpush.msra.mxu0 %v35
  %75 = vmatpush.msra.mxu0 %v34
  %76 = vmatpush.msra.mxu0 %v33
  %77 = vmatpush.msra.mxu0 %v32
  %78 = vmatpush.msra.mxu0 %v31
  %79 = vmatpush.msra.mxu0 %v30
  %80 = vmatpush.msra.mxu0 %v29
  %81 = vmatpush.msra.mxu0 %v28
  %82 = vmatmul.f32.gmra.mxu0 %v26
  %v83 = vpop.f32.mrf.mxu0
  %v84 = vadd.f32 %v60, %v83
  %85 = vdwg.mxu0
  %86 = vmatpush.msra.mxu0 0.0
  %87 = vmatpush.msra.mxu0 0.0
  %88 = vmatpush.msra.mxu0 %v57
  %89 = vmatpush.msra.mxu0 %v56
  %90 = vmatpush.msra.mxu0 %v55
  %91 = vmatpush.msra.mxu0 %v54
  %92 = vmatpush.msra.mxu0 %v53
  %93 = vmatpush.msra.mxu0 %v52
  %94 = vmatpush.msra.mxu0 %v51
  %95 = vmatpush.msra.mxu0 %v50
  %96 = vmatpush.msra.mxu0 %v49
  %97 = vmatpush.msra.mxu0 %v48
  %98 = vmatpush.msra.mxu0 %v47
  %99 = vmatpush.msra.mxu0 %v46
  %100 = vmatpush.msra.mxu0 %v45
  %101 = vmatpush.msra.mxu0 %v44
  %102 = vmatmul.f32.gmra.mxu0 %v64
  %v103 = vpop.f32.mrf.mxu0
  %v104 = vadd.f32 %v84, %v103
  %105 = vdwg.mxu0
  %v106 = vmax.f32 %v104, 0.0
  %v107 = vld [vmem:[%s3] sm:$0xff]
  %v108 = vld [vmem:[%s3 + $0x8] sm:$0xff]
  %v109 = vld [vmem:[%s3 + $0x10] sm:$0xff]
  %v110 = vld [vmem:[%s3 + $0x18] sm:$0xff]
  %v111 = vld [vmem:[%s3 + $0x20] sm:$0xff]
  %v112 = vld [vmem:[%s3 + $0x28] sm:$0xff]
  %v113 = vld [vmem:[%s3 + $0x30] sm:$0xff]
  %v114 = vld [vmem:[%s3 + $0x38] sm:$0xff]
  %v115 = vld [vmem:[%s3 + $0x40] sm:$0xff]
  %v116 = vld [vmem:[%s3 + $0x48] sm:$0xff]
  %v117 = vld [vmem:[%s3 + $0x50] sm:$0xff]
  %v118 = vld [vmem:[%s3 + $0x58] sm:$0xff]
  %v119 = vld [vmem:[%s3 + $0x60] sm:$0xff]
  %v120 = vld [vmem:[%s3 + $0x68] sm:$0xff]
  %v121 = vld [vmem:[%s3 + $0x70] sm:$0xff]
  %v122 = vld [vmem:[%s4] sm:$0x1]
  %v124 = vperm.slane %v122, 0
  %vm126 = vcmask 982016
  %v128 = vsel %vm126, %v106, 0
  %130 = vmatpush.msra.mxu0 0.0
  %131 = vmatpush.msra.mxu0 %v121
  %132 = vmatpush.msra.mxu0 %v120
  %133 = vmatpush.msra.mxu0 %v119
  %134 = vmatpush.msra.mxu0 %v118
  %135 = vmatpush.msra.mxu0 %v117
  %136 = vmatpush.msra.mxu0 %v116
  %137 = vmatpush.msra.mxu0 %v115
  %138 = vmatpush.msra.mxu0 %v114
  %139 = vmatpush.msra.mxu0 %v113
  %140 = vmatpush.msra.mxu0 %v112
  %141 = vmatpush.msra.mxu0 %v111
  %142 = vmatpush.msra.mxu0 %v110
  %143 = vmatpush.msra.mxu0 %v109
  %144 = vmatpush.msra.mxu0 %v108
  %145 = vmatpush.msra.mxu0 %v107
  %146 = vmatmul.f32.gmra.mxu0 %v128
  %v147 = vpop.f32.mrf.mxu0
  %v148 = vadd.f32 %v124, %v147
  %149 = vdwg.mxu0
  %v150 = vmax.f32 %v148, 0.0
  %v151 = vld [vmem:[%s5] sm:$0xff]
  %v152 = vld [vmem:[%s5 + $0x8] sm:$0xff]
  %v153 = vld [vmem:[%s5 + $0x10] sm:$0xff]
  %v154 = vld [vmem:[%s5 + $0x18] sm:$0xff]
  %v155 = vld [vmem:[%s5 + $0x20] sm:$0xff]
  %v156 = vld [vmem:[%s5 + $0x28] sm:$0xff]
  %v157 = vld [vmem:[%s5 + $0x30] sm:$0xff]
  %v158 = vld [vmem:[%s5 + $0x38] sm:$0xff]
  %v159 = vld [vmem:[%s5 + $0x40] sm:$0xff]
  %v160 = vld [vmem:[%s5 + $0x48] sm:$0xff]
  %v161 = vld [vmem:[%s5 + $0x50] sm:$0xff]
  %v162 = vld [vmem:[%s5 + $0x58] sm:$0xff]
  %v163 = vld [vmem:[%s5 + $0x60] sm:$0xff]
  %v164 = vld [vmem:[%s5 + $0x68] sm:$0xff]
  %v165 = vld [vmem:[%s5 + $0x70] sm:$0xff]
  %v166 = vld [vmem:[%s6] sm:$0x1]
  %v168 = vperm.slane %v166, 0
  %v171 = vsel %vm126, %v150, 0
  %173 = vmatpush.msra.mxu0 0.0
  %174 = vmatpush.msra.mxu0 %v165
  %175 = vmatpush.msra.mxu0 %v164
  %176 = vmatpush.msra.mxu0 %v163
  %177 = vmatpush.msra.mxu0 %v162
  %178 = vmatpush.msra.mxu0 %v161
  %179 = vmatpush.msra.mxu0 %v160
  %180 = vmatpush.msra.mxu0 %v159
  %181 = vmatpush.msra.mxu0 %v158
  %182 = vmatpush.msra.mxu0 %v157
  %183 = vmatpush.msra.mxu0 %v156
  %184 = vmatpush.msra.mxu0 %v155
  %185 = vmatpush.msra.mxu0 %v154
  %186 = vmatpush.msra.mxu0 %v153
  %187 = vmatpush.msra.mxu0 %v152
  %188 = vmatpush.msra.mxu0 %v151
  %189 = vmatmul.f32.gmra.mxu0 %v171
  %v190 = vpop.f32.mrf.mxu0
  %v191 = vadd.f32 %v168, %v190
  %192 = vdwg.mxu0
  %vm193 = vcmask 97280
  %194 = vst.msk [vmem:[%s7] sm:$0xff] %vm193, %v191
  // Predicated region
  $region30: #{my_regressor_forward.1} parent=0 // pred_check
    _
  $region31: #{my_regressor_forward.1} parent=0 // pred_check_branch
    %196 = sbr.rel (0) target = $region33
  $region32: #{my_regressor_forward.1} parent=0 // pred_region
    _
  $region33: #{my_regressor_forward.1} parent=0 // pred_fallthru
    _
  // Predicated region
  $region34: #{my_regressor_forward.1} parent=0 // pred_check
    _
  $region35: #{my_regressor_forward.1} parent=0 // pred_check_branch
    %198 = sbr.rel (0) target = $region37
  $region36: #{my_regressor_forward.1} parent=0 // pred_region
    _
  $region37: #{my_regressor_forward.1} parent=0 // pred_fallthru
    _

</llo_original>
